<compile_context>
chip_gen: v5e
topology: v5e:2x2
jax: 0.10.0
libtpu: 0.0.40
codegen_flags: <defaults>
</compile_context>

<pallas_src>
import functools
import math

import jax
import jax.numpy as jnp
from jax.experimental import pallas as pl
from jax.experimental.pallas import tpu as pltpu


def _circular_pad_kernel(x_ref, o_ref, *, pad_left, pad_right, pad_top, pad_bottom):
    """x_ref block: (T, H, W)  ->  o_ref block: (T, H + pt + pb, W + pl + pr)."""
    _, H, W = x_ref.shape
    p_t, p_b = pad_top, pad_bottom
    p_l, p_r = pad_left, pad_right

    # Center: touched exactly once (no concatenate intermediates).
    o_ref[:, p_t:p_t + H, p_l:p_l + W] = x_ref[...]

    # Row wrap (top / bottom strips).
    if p_t > 0:
        o_ref[:, :p_t, p_l:p_l + W] = x_ref[:, H - p_t:, :]
    if p_b > 0:
        o_ref[:, p_t + H:, p_l:p_l + W] = x_ref[:, :p_b, :]

    # Column wrap (left / right strips).
    if p_l > 0:
        o_ref[:, p_t:p_t + H, :p_l] = x_ref[:, :, W - p_l:]
    if p_r > 0:
        o_ref[:, p_t:p_t + H, p_l + W:] = x_ref[:, :, :p_r]

    # Corners.
    if p_t > 0 and p_l > 0:
        o_ref[:, :p_t, :p_l] = x_ref[:, H - p_t:, W - p_l:]
    if p_t > 0 and p_r > 0:
        o_ref[:, :p_t, p_l + W:] = x_ref[:, H - p_t:, :p_r]
    if p_b > 0 and p_l > 0:
        o_ref[:, p_t + H:, :p_l] = x_ref[:, :p_b, W - p_l:]
    if p_b > 0 and p_r > 0:
        o_ref[:, p_t + H:, p_l + W:] = x_ref[:, :p_b, :p_r]


def _round_up(x, m):
    return ((x + m - 1) // m) * m


def _tpu_vmem_capacity_bytes(default_bytes=64 << 20):
    """Physical VMEM bytes; conservative (v7x-sized) default if query fails."""
    try:
        info = pltpu.get_tpu_info()
        cap = getattr(info, "vmem_capacity_bytes", None)
        if cap:
            return int(cap)
    except Exception:
        pass
    return default_bytes


def _pick_tile(nc, per_slice_padded_bytes, target_block_bytes, min_steps=8):
    """How many (H,W)/(Ho,Wo) slices to move per grid step.

    Constraints:
      * tile * per_slice_padded_bytes ~<= target_block_bytes (VMEM-padded!)
      * at least `min_steps` grid steps when nc allows it (>=4 per v7x core)
      * prefer an exact divisor of nc when one exists near the cap (avoids a
        ragged, masked last block); otherwise use the cap with a cdiv grid.
    """
    max_tile = max(1, int(target_block_bytes // max(per_slice_padded_bytes, 1)))
    if nc >= min_steps:
        max_tile = min(max_tile, max(1, nc // min_steps))
    max_tile = max(1, min(max_tile, nc))

    best_div = 1
    for d in range(max_tile, 0, -1):
        if nc % d == 0:
            best_div = d
            break
    if best_div * 2 >= max_tile:
        return best_div
    return max_tile


def circular_pad(x, padding=(1, 1, 1, 1)):
    """JAX/Pallas equivalent of the PyTorch `circular_pad` module.

    Args:
      x: array with >= 2 dims; padding applies circularly to the last two axes
         (NCHW in the reference module).
      padding: (pad_left, pad_right, pad_top, pad_bottom), PyTorch F.pad order.
    Returns:
      array of shape (..., H + pt + pb, W + pl + pr), same dtype as x.
    """
    p_l, p_r, p_t, p_b = (int(p) for p in padding)
    if min(p_l, p_r, p_t, p_b) < 0:
        raise ValueError("circular_pad: negative padding is not supported")
    if x.ndim < 2:
        raise ValueError("circular_pad: input must have at least 2 dims")
    *lead, H, W = x.shape
    if p_t > H or p_b > H or p_l > W or p_r > W:
        # PyTorch rejects circular padding that wraps around more than once.
        raise ValueError(
            "circular_pad: padding must not exceed the corresponding input dimension")

    Ho = H + p_t + p_b
    Wo = W + p_l + p_r
    nc = math.prod(lead) if lead else 1
    x_flat = x.reshape(nc, H, W)

    # --- (8,128)-padded VMEM footprint per slice (in + out) -----------------
    itemsize = jnp.dtype(x.dtype).itemsize
    sublane = max(8, 32 // itemsize)          # f32: 8, bf16: 16, int8/fp8: 32
    per_slice_padded = (
        _round_up(H, sublane) * _round_up(W, 128)
        + _round_up(Ho, sublane) * _round_up(Wo, 128)
    ) * itemsize

    # --- hardware-aware block target & VMEM cap -----------------------------
    vmem_cap = _tpu_vmem_capacity_bytes()
    if vmem_cap >= (128 << 20):               # v5e / v6e: 128 MiB physical VMEM
        target_block = 8 << 20
        vmem_cap_limit = 80 << 20
    else:                                     # v7x: 64 MiB physical VMEM
        target_block = 5 << 20
        vmem_cap_limit = 48 << 20

    tile = _pick_tile(nc, per_slice_padded, target_block)
    num_blocks = pl.cdiv(nc, tile)

    block_padded = tile * per_slice_padded
    # Double-buffered in + out blocks + Mosaic internal scratch headroom,
    # capped well below physical VMEM on every generation.
    vmem_limit = int(min(vmem_cap_limit,
                         max(16 << 20, 2 * block_padded + (4 << 20))))

    kernel = functools.partial(
        _circular_pad_kernel,
        pad_left=p_l, pad_right=p_r, pad_top=p_t, pad_bottom=p_b,
    )

    out_flat = pl.pallas_call(
        kernel,
        out_shape=jax.ShapeDtypeStruct((nc, Ho, Wo), x.dtype),
        grid=(num_blocks,),
        in_specs=[pl.BlockSpec((tile, H, W), lambda i: (i, 0, 0))],
        out_specs=pl.BlockSpec((tile, Ho, Wo), lambda i: (i, 0, 0)),
        compiler_params=pltpu.CompilerParams(
            dimension_semantics=("parallel",),
            vmem_limit_bytes=vmem_limit,
        ),
    )(x_flat)

    return out_flat.reshape(*lead, Ho, Wo) if lead else out_flat.reshape(Ho, Wo)


if __name__ == "__main__":
    key = jax.random.PRNGKey(0)

    # Case 1: module default symmetric padding (exercises all 9 stores).
    N, C, H, W = 2, 4, 16, 16
    x = jax.random.normal(key, (N, C, H, W), dtype=jnp.float32)
    padding = (1, 1, 1, 1)
    out = jax.block_until_ready(circular_pad(x, padding))
    p_l, p_r, p_t, p_b = padding
    ref = jnp.pad(x, ((0, 0), (0, 0), (p_t, p_b), (p_l, p_r)), mode="wrap")
    assert out.shape == ref.shape, (out.shape, ref.shape)
    assert out.dtype == ref.dtype, (out.dtype, ref.dtype)
    assert jnp.array_equal(out, ref), "circular_pad mismatch (symmetric padding)"

    # Case 2: asymmetric padding with a zero side (guarded store paths).
    padding2 = (2, 1, 0, 3)
    out2 = jax.block_until_ready(circular_pad(x, padding2))
    p_l, p_r, p_t, p_b = padding2
    ref2 = jnp.pad(x, ((0, 0), (0, 0), (p_t, p_b), (p_l, p_r)), mode="wrap")
    assert jnp.array_equal(out2, ref2), "circular_pad mismatch (asymmetric padding)"

    # Case 3: prime-ish N*C (29) in bf16 -> exercises cdiv grid with a ragged
    # last block and the 16-sublane padded-byte accounting.
    x3 = jax.random.normal(jax.random.PRNGKey(0), (1, 29, 16, 16)).astype(jnp.bfloat16)
    out3 = jax.block_until_ready(circular_pad(x3, (1, 1, 1, 1)))
    ref3 = jnp.pad(x3, ((0, 0), (0, 0), (1, 1), (1, 1)), mode="wrap")
    assert out3.shape == ref3.shape and out3.dtype == ref3.dtype
    assert jnp.array_equal(out3, ref3), "circular_pad mismatch (ragged grid / bf16)"

    print("KERNEL_OK")
</pallas_src>

<mosaic_0001>
module attributes {stable_mosaic.version = 11 : i64} {
  func.func @_circular_pad_kernel(%arg0: i32, %arg1: memref<1x16x16xf32, #tpu.memory_space<vmem>>, %arg2: memref<1x18x18xf32, #tpu.memory_space<vmem>>) attributes {dimension_semantics = [#tpu.dimension_semantics<parallel>], iteration_bounds = array<i64: 8>, scalar_prefetch = 0 : i64, scratch_operands = 0 : i64, tpu.core_type = #tpu.core_type<tc>, window_params = [{transform_indices = @transform_0, window_bounds = array<i64: 1, 16, 16>}, {transform_indices = @transform_1, window_bounds = array<i64: 1, 18, 18>}]} {
    %c0 = arith.constant 0 : index
    %c0_0 = arith.constant 0 : index
    %c0_1 = arith.constant 0 : index
    %0 = vector.load %arg1[%c0, %c0_0, %c0_1] : memref<1x16x16xf32, #tpu.memory_space<vmem>>, vector<1x16x16xf32>
    %c0_2 = arith.constant 0 : index
    %c1 = arith.constant 1 : index
    %c1_3 = arith.constant 1 : index
    %1 = vector.load %arg2[%c0_2, %c1, %c1_3] : memref<1x18x18xf32, #tpu.memory_space<vmem>>, vector<1x16x16xf32>
    tpu.vector_store %arg2[%c0_2, %c1, %c1_3], %0 {strides = array<i32>} : memref<1x18x18xf32, #tpu.memory_space<vmem>>, vector<1x16x16xf32>,
    %c0_4 = arith.constant 0 : index
    %c15 = arith.constant 15 : index
    %c0_5 = arith.constant 0 : index
    %2 = vector.load %arg1[%c0_4, %c15, %c0_5] : memref<1x16x16xf32, #tpu.memory_space<vmem>>, vector<1x1x16xf32>
    %c0_6 = arith.constant 0 : index
    %c0_7 = arith.constant 0 : index
    %c1_8 = arith.constant 1 : index
    %3 = vector.load %arg2[%c0_6, %c0_7, %c1_8] : memref<1x18x18xf32, #tpu.memory_space<vmem>>, vector<1x1x16xf32>
    tpu.vector_store %arg2[%c0_6, %c0_7, %c1_8], %2 {strides = array<i32>} : memref<1x18x18xf32, #tpu.memory_space<vmem>>, vector<1x1x16xf32>,
    %c0_9 = arith.constant 0 : index
    %c0_10 = arith.constant 0 : index
    %c0_11 = arith.constant 0 : index
    %4 = vector.load %arg1[%c0_9, %c0_10, %c0_11] : memref<1x16x16xf32, #tpu.memory_space<vmem>>, vector<1x1x16xf32>
    %c0_12 = arith.constant 0 : index
    %c17 = arith.constant 17 : index
    %c1_13 = arith.constant 1 : index
    %5 = vector.load %arg2[%c0_12, %c17, %c1_13] : memref<1x18x18xf32, #tpu.memory_space<vmem>>, vector<1x1x16xf32>
    tpu.vector_store %arg2[%c0_12, %c17, %c1_13], %4 {strides = array<i32>} : memref<1x18x18xf32, #tpu.memory_space<vmem>>, vector<1x1x16xf32>,
    %c0_14 = arith.constant 0 : index
    %c0_15 = arith.constant 0 : index
    %c15_16 = arith.constant 15 : index
    %6 = vector.load %arg1[%c0_14, %c0_15, %c15_16] : memref<1x16x16xf32, #tpu.memory_space<vmem>>, vector<1x16x1xf32>
    %c0_17 = arith.constant 0 : index
    %c1_18 = arith.constant 1 : index
    %c0_19 = arith.constant 0 : index
    %7 = vector.load %arg2[%c0_17, %c1_18, %c0_19] : memref<1x18x18xf32, #tpu.memory_space<vmem>>, vector<1x16x1xf32>
    tpu.vector_store %arg2[%c0_17, %c1_18, %c0_19], %6 {strides = array<i32>} : memref<1x18x18xf32, #tpu.memory_space<vmem>>, vector<1x16x1xf32>,
    %c0_20 = arith.constant 0 : index
    %c0_21 = arith.constant 0 : index
    %c0_22 = arith.constant 0 : index
    %8 = vector.load %arg1[%c0_20, %c0_21, %c0_22] : memref<1x16x16xf32, #tpu.memory_space<vmem>>, vector<1x16x1xf32>
    %c0_23 = arith.constant 0 : index
    %c1_24 = arith.constant 1 : index
    %c17_25 = arith.constant 17 : index
    %9 = vector.load %arg2[%c0_23, %c1_24, %c17_25] : memref<1x18x18xf32, #tpu.memory_space<vmem>>, vector<1x16x1xf32>
    tpu.vector_store %arg2[%c0_23, %c1_24, %c17_25], %8 {strides = array<i32>} : memref<1x18x18xf32, #tpu.memory_space<vmem>>, vector<1x16x1xf32>,
    %c0_26 = arith.constant 0 : index
    %c15_27 = arith.constant 15 : index
    %c15_28 = arith.constant 15 : index
    %10 = vector.load %arg1[%c0_26, %c15_27, %c15_28] : memref<1x16x16xf32, #tpu.memory_space<vmem>>, vector<1x1x1xf32>
    %c0_29 = arith.constant 0 : index
    %c0_30 = arith.constant 0 : index
    %c0_31 = arith.constant 0 : index
    %11 = vector.load %arg2[%c0_29, %c0_30, %c0_31] : memref<1x18x18xf32, #tpu.memory_space<vmem>>, vector<1x1x1xf32>
    tpu.vector_store %arg2[%c0_29, %c0_30, %c0_31], %10 {strides = array<i32>} : memref<1x18x18xf32, #tpu.memory_space<vmem>>, vector<1x1x1xf32>,
    %c0_32 = arith.constant 0 : index
    %c15_33 = arith.constant 15 : index
    %c0_34 = arith.constant 0 : index
    %12 = vector.load %arg1[%c0_32, %c15_33, %c0_34] : memref<1x16x16xf32, #tpu.memory_space<vmem>>, vector<1x1x1xf32>
    %c0_35 = arith.constant 0 : index
    %c0_36 = arith.constant 0 : index
    %c17_37 = arith.constant 17 : index
    %13 = vector.load %arg2[%c0_35, %c0_36, %c17_37] : memref<1x18x18xf32, #tpu.memory_space<vmem>>, vector<1x1x1xf32>
    tpu.vector_store %arg2[%c0_35, %c0_36, %c17_37], %12 {strides = array<i32>} : memref<1x18x18xf32, #tpu.memory_space<vmem>>, vector<1x1x1xf32>,
    %c0_38 = arith.constant 0 : index
    %c0_39 = arith.constant 0 : index
    %c15_40 = arith.constant 15 : index
    %14 = vector.load %arg1[%c0_38, %c0_39, %c15_40] : memref<1x16x16xf32, #tpu.memory_space<vmem>>, vector<1x1x1xf32>
    %c0_41 = arith.constant 0 : index
    %c17_42 = arith.constant 17 : index
    %c0_43 = arith.constant 0 : index
    %15 = vector.load %arg2[%c0_41, %c17_42, %c0_43] : memref<1x18x18xf32, #tpu.memory_space<vmem>>, vector<1x1x1xf32>
    tpu.vector_store %arg2[%c0_41, %c17_42, %c0_43], %14 {strides = array<i32>} : memref<1x18x18xf32, #tpu.memory_space<vmem>>, vector<1x1x1xf32>,
    %c0_44 = arith.constant 0 : index
    %c0_45 = arith.constant 0 : index
    %c0_46 = arith.constant 0 : index
    %16 = vector.load %arg1[%c0_44, %c0_45, %c0_46] : memref<1x16x16xf32, #tpu.memory_space<vmem>>, vector<1x1x1xf32>
    %c0_47 = arith.constant 0 : index
    %c17_48 = arith.constant 17 : index
    %c17_49 = arith.constant 17 : index
    %17 = vector.load %arg2[%c0_47, %c17_48, %c17_49] : memref<1x18x18xf32, #tpu.memory_space<vmem>>, vector<1x1x1xf32>
    tpu.vector_store %arg2[%c0_47, %c17_48, %c17_49], %16 {strides = array<i32>} : memref<1x18x18xf32, #tpu.memory_space<vmem>>, vector<1x1x1xf32>,
    return
  }
  func.func @transform_0(%arg0: i32) -> (i32, i32, i32) {
    %c0_i32 = arith.constant 0 : i32
    %c0_i32_0 = arith.constant 0 : i32
    %c0_i32_1 = arith.constant 0 : i32
    return %arg0, %c0_i32, %c0_i32_0 : i32, i32, i32
  }
  func.func @transform_1(%arg0: i32) -> (i32, i32, i32) {
    %c0_i32 = arith.constant 0 : i32
    %c0_i32_0 = arith.constant 0 : i32
    %c0_i32_1 = arith.constant 0 : i32
    return %arg0, %c0_i32, %c0_i32_0 : i32, i32, i32
  }
}

</mosaic_0001>

<llo_original>
// kernel: tpu_custom_call.1
$region0: #{tpu_custom_call.1}
  #allocation0 [shape = 'u32[]', space=smem, size = 0x4, offset = 0x4, fixed_abs, tag = 'smem constant byte address 0x4 - core index']
  #allocation1 [shape = 'u32[72,128]{1,0:T(1,128)}', space=vmem, size = 0x9000, scoped, tag = 'internal scratch']
  %s0 = inlined_call_operand.hbm [shape: f32[8,16,16], index: 0, kind: input, shape index: {}]
  %s1 = inlined_call_operand.vmem [shape: f32[8,18,18], index: 1, kind: output, shape index: {}]
  %s2 = sld [smem:[#allocation0]]
  $region41: #{tpu_custom_call.1} parent=0
    _
  %s4 = ssub.s32 1, %s2
  %s5 = scalar_select 0, %s4, %s2
  $region1: #{tpu_custom_call.1} parent=0
    #allocation2 [shape = 'u8[16384]{0}', space=vmem, size = 0x4000, scoped, tag = 'input window, operand 0']
    #allocation3 [shape = 's32[2]{0}', space=sflag, size = 0x8, scoped, tag = 'scoped memory for tpu_custom_call.1']
    %6 = vsyncpa [#allocation3], 0
    %s7 = scalar_lea.sflag [#allocation3], 1
    %8 = vsyncpa %s7, 0
    loop: start=0, step=1, limit=10
    $region2: #{tpu_custom_call.1} parent=1 // loop_pre_header
      _
    $region3: #{tpu_custom_call.1} parent=1 // loop_header
      %s10 = sphi 0, %s14
      %p11 = scmp.ge.s32.totalorder %s10, 10
      %s20 = sphi 0, %s22
      %s23 = sphi 0, %s20
      %s24 = sphi 0, %s23
      %s40 = sphi 0, %s24
      %s46 = sphi 0, %s48
      %s49 = sphi 0, %s46
      %s50 = sphi 0, %s49
      %s66 = sphi 0, %s50
    $region4: #{tpu_custom_call.1} parent=1 // loop_header_branch
      %13 = sbr.rel (%p11) target = $region8
    $region5: #{tpu_custom_call.1} parent=1 // loop_body
      %s15 = ssub.s32 %s10, 1
      %s16 = ssub.s32 %s10, 2
      %s17 = sadd.s32 %s10, 1
      %s18 = ssub.s32 %s10, %s17
      %p19 = scmp.eq.s32.totalorder %s18, 0
      %s21 = sadd.s32 %s20, 1
      %s22 = scalar_select %p19, %s20, %s21
      %p25 = pneg %p19
      %p26 = scmp.eq.s32.totalorder %s10, 7
      %p27 = por %p25, %p26
      %p28 = scmp.ne.s32.totalorder %s20, %s23
      %p29 = scmp.eq.s32.totalorder %s10, 0
      %p30 = por %p28, %p29
      %p31 = scmp.ne.s32.totalorder %s20, %s23
      %p32 = scmp.eq.s32.totalorder %s15, 7
      %p33 = por %p31, %p32
      %p34 = scmp.ne.s32.totalorder %s23, %s24
      %p35 = scmp.eq.s32.totalorder %s15, 0
      %p36 = por %p34, %p35
      %p37 = scmp.ne.s32.totalorder %s23, %s24
      %p38 = scmp.eq.s32.totalorder %s16, 7
      %p39 = por %p37, %p38
      %p41 = scmp.ne.s32.totalorder %s24, %s40
      %p42 = scmp.eq.s32.totalorder %s16, 0
      %p43 = por %p41, %p42
      %s44 = ssub.s32 %s10, %s17
      %p45 = scmp.eq.s32.totalorder %s44, 0
      %s47 = sadd.s32 %s46, 1
      %s48 = scalar_select %p45, %s46, %s47
      %p51 = pneg %p45
      %p52 = scmp.eq.s32.totalorder %s10, 7
      %p53 = por %p51, %p52
      %p54 = scmp.ne.s32.totalorder %s46, %s49
      %p55 = scmp.eq.s32.totalorder %s10, 0
      %p56 = por %p54, %p55
      %p57 = scmp.ne.s32.totalorder %s46, %s49
      %p58 = scmp.eq.s32.totalorder %s15, 7
      %p59 = por %p57, %p58
      %p60 = scmp.ne.s32.totalorder %s49, %s50
      %p61 = scmp.eq.s32.totalorder %s15, 0
      %p62 = por %p60, %p61
      %p63 = scmp.ne.s32.totalorder %s49, %s50
      %p64 = scmp.eq.s32.totalorder %s16, 7
      %p65 = por %p63, %p64
      %p67 = scmp.ne.s32.totalorder %s50, %s66
      %p68 = scmp.eq.s32.totalorder %s16, 0
      %p69 = por %p67, %p68
      %p70 = scmp.le.s32.totalorder 1, %s10
      %p71 = scmp.lt.s32.totalorder %s10, 9
      %p72 = pnand %p70, %p71
      %p73 = pneg %p72
      // Predicated region
      $region9: #{tpu_custom_call.1} parent=5 // pred_check
        _
      $region10: #{tpu_custom_call.1} parent=5 // pred_check_branch
        %75 = sbr.rel (%p72) target = $region12
      $region11: #{tpu_custom_call.1} parent=5 // pred_region
        %s76 = ssub.s32 %s10, 1
      $region12: #{tpu_custom_call.1} parent=5 // pred_fallthru
        _
      %p77 = scmp.lt.s32.totalorder %s10, 8
      // Predicated region
      $region13: #{tpu_custom_call.1} parent=5 // pred_check
        %p78 = pneg %p77
      $region14: #{tpu_custom_call.1} parent=5 // pred_check_branch
        %80 = sbr.rel (%p78) target = $region16
      $region15: #{tpu_custom_call.1} parent=5 // pred_region
        // Predicated region
        $region17: #{tpu_custom_call.1} parent=15 // pred_check
          %p81 = pneg %p30
        $region18: #{tpu_custom_call.1} parent=15 // pred_check_branch
          %83 = sbr.rel (%p81) target = $region20
        $region19: #{tpu_custom_call.1} parent=15 // pred_region
          %s84 = sand.u32 %s20, 1
          %s85 = scalar_lea.sflag [#allocation3], %s84
          %s86 = sand.u32 %s20, 1
          %s87 = smul.addr %s86, 16
          %s88 = scalar_lea.vmem [#allocation2], %s87
          %90 = vsyncadd %s85, 0
          %s91 = smul.addr %s10, 2
          %s92 = smul.addr %s91, 8
          %s93 = scalar_lea.hbm %s0, %s92
          %s94 = sshll.u32 %s93, 4
          %s95 = int_to_ptr.hbm [resolvable:$true] %s94
          %s96 = sshll.u32 %s88, 4
          %s97 = int_to_ptr.vmem [resolvable:$true] %s96
          %102 = dma.hbm_to_vmem [thread:$0]  %s95, 256, %s97, %s85, 128, 128, 8
        $region20: #{tpu_custom_call.1} parent=15 // pred_fallthru
          _
      $region16: #{tpu_custom_call.1} parent=5 // pred_fallthru
        _
      %p103 = scmp.le.s32.totalorder 1, %s10
      %p104 = scmp.lt.s32.totalorder %s10, 9
      %p105 = pnand %p103, %p104
      %p106 = pneg %p105
      // Predicated region
      $region21: #{tpu_custom_call.1} parent=5 // pred_check
        _
      $region22: #{tpu_custom_call.1} parent=5 // pred_check_branch
        %108 = sbr.rel (%p105) target = $region24
      $region23: #{tpu_custom_call.1} parent=5 // pred_region
        %s109 = ssub.s32 %s10, 1
        %s110 = sand.u32 %s23, 1
        %s111 = scalar_lea.sflag [#allocation3], %s110
        %s112 = sand.u32 %s23, 1
        %s113 = smul.addr %s112, 16
        %s114 = scalar_lea.vmem [#allocation2], %s113
        // Predicated region
        $region25: #{tpu_custom_call.1} parent=23 // pred_check
          %p115 = pneg %p36
        $region26: #{tpu_custom_call.1} parent=23 // pred_check_branch
          %117 = sbr.rel (%p115) target = $region28
        $region27: #{tpu_custom_call.1} parent=23 // pred_region
          %119 = dma.done %s111, 256
        $region28: #{tpu_custom_call.1} parent=23 // pred_fallthru
          _
        %s120 = sand.u32 %s23, 1
        %s121 = scalar_lea.sflag [#allocation3], %s120
        %s122 = sand.u32 %s23, 1
        %s123 = smul.addr %s122, 16
        %s124 = scalar_lea.vmem [#allocation2], %s123
        %p125 = pneg %p36
        %p126 = pneg %p33
        %p127 = pneg %p62
        %p128 = pneg %p59
        %p129 = scmp.lt.s32.totalorder %s15, 7
        %s130 = scalar_select %p129, %s15, 7
        %s131 = smul.addr %s130, 3
        %s132 = smul.addr %s131, 8
        %s133 = scalar_lea.vmem %s1, %s132
        %p134 = scmp.lt.s32.totalorder %s15, 7
        %s135 = scalar_select %p134, %s15, 7
        %s136 = smul.addr %s135, 3
        %s137 = smul.addr %s136, 8
        %s138 = scalar_lea.vmem %s1, %s137
        %v139 = vld [vmem:[%s114] sm:$0xff]
        %v140 = vld [vmem:[%s114 + $0x8] sm:$0xff]
        %143 = vrot.lane.b32.xlu0 %v139, 1
        %v144 = vpop.permute.xlu0 %143
        %145 = vrot.lane.b32.xlu0 %v140, 1
        %v146 = vpop.permute.xlu0 %145
        %vm149 = vcmask 138248
        %150 = vst.msk [vmem:[%s138 + $0x1] sm:$0xff] %vm149, %v144
        %151 = vst.msk [vmem:[%s138 + $0x9] sm:$0xff] %vm149, %v146
        %v152 = vld [vmem:[%s114 + $0xf] sm:$0x1]
        %154 = vrot.lane.b32.xlu0 %v152, 1
        %v155 = vpop.permute.xlu0 %154
        %vm157 = vcmask 131080
        %158 = vst.msk [vmem:[%s138] sm:$0x1] %vm157, %v155
        %v159 = vld [vmem:[%s114] sm:$0x1]
        %161 = vrot.lane.b32.xlu0 %v159, 1
        %v162 = vpop.permute.xlu0 %161
        %164 = vst.msk [vmem:[%s138 + $0x11] sm:$0x1] %vm157, %v162
        %v165 = vld [vmem:[%s114] sm:$0xff]
        %v166 = vld [vmem:[%s114 + $0x8] sm:$0xff]
        %169 = vrot.lane.b32.xlu0 %v165, 113
        %v170 = vpop.permute.xlu0 %169
        %171 = vrot.lane.b32.xlu0 %v166, 113
        %v172 = vpop.permute.xlu0 %171
        %vm175 = vcmask 7168
        %176 = vst.msk [vmem:[%s138 + $0x1] sm:$0xff] %vm175, %v170
        %177 = vst.msk [vmem:[%s138 + $0x9] sm:$0xff] %vm175, %v172
        %v178 = vld [vmem:[%s114] sm:$0xff]
        %v179 = vld [vmem:[%s114 + $0x8] sm:$0xff]
        %182 = vrot.lane.b32.xlu0 %v178, 17
        %v183 = vpop.permute.xlu0 %182
        %184 = vrot.lane.b32.xlu0 %v179, 17
        %v185 = vpop.permute.xlu0 %184
        %vm188 = vcmask 146568
        %189 = vst.msk [vmem:[%s138 + $0x1] sm:$0xff] %vm188, %v183
        %190 = vst.msk [vmem:[%s138 + $0x9] sm:$0xff] %vm188, %v185
        %v191 = vld [vmem:[%s114 + $0xf] sm:$0x1]
        %193 = vrot.lane.b32.xlu0 %v191, 113
        %v194 = vpop.permute.xlu0 %193
        %vm196 = vcmask 0
        %197 = vst.msk [vmem:[%s138] sm:$0x1] %vm196, %v194
        %v198 = vld [vmem:[%s114 + $0xf] sm:$0x1]
        %200 = vrot.lane.b32.xlu0 %v198, 17
        %v201 = vpop.permute.xlu0 %200
        %vm203 = vcmask 139400
        %204 = vst.msk [vmem:[%s138] sm:$0x1] %vm203, %v201
        %v205 = vld [vmem:[%s114] sm:$0x1]
        %207 = vrot.lane.b32.xlu0 %v205, 113
        %v208 = vpop.permute.xlu0 %207
        %210 = vst.msk [vmem:[%s138 + $0x11] sm:$0x1] %vm196, %v208
        %v211 = vld [vmem:[%s114] sm:$0x1]
        %213 = vrot.lane.b32.xlu0 %v211, 17
        %v214 = vpop.permute.xlu0 %213
        %216 = vst.msk [vmem:[%s138 + $0x11] sm:$0x1] %vm203, %v214
        %p217 = scmp.lt.s32.totalorder %s15, 7
        %s218 = scalar_select %p217, %s15, 7
        %s219 = smul.addr %s218, 3
        %s220 = smul.addr %s219, 8
        %s221 = scalar_lea.vmem %s1, %s220
        // Predicated region
        $region29: #{tpu_custom_call.1} parent=23 // pred_check
          %p222 = pneg %p59
        $region30: #{tpu_custom_call.1} parent=23 // pred_check_branch
          %224 = sbr.rel (%p222) target = $region32
        $region31: #{tpu_custom_call.1} parent=23 // pred_region
          _
        $region32: #{tpu_custom_call.1} parent=23 // pred_fallthru
          _
      $region24: #{tpu_custom_call.1} parent=5 // pred_fallthru
        _
      %p225 = scmp.le.s32.totalorder 2, %s10
      // Predicated region
      $region33: #{tpu_custom_call.1} parent=5 // pred_check
        %p226 = pneg %p225
      $region34: #{tpu_custom_call.1} parent=5 // pred_check_branch
        %228 = sbr.rel (%p226) target = $region36
      $region35: #{tpu_custom_call.1} parent=5 // pred_region
        %s229 = ssub.s32 %s10, 2
        // Predicated region
        $region37: #{tpu_custom_call.1} parent=35 // pred_check
          %p230 = pneg %p65
        $region38: #{tpu_custom_call.1} parent=35 // pred_check_branch
          %232 = sbr.rel (%p230) target = $region40
        $region39: #{tpu_custom_call.1} parent=35 // pred_region
          %p233 = scmp.lt.s32.totalorder %s16, 7
          %s234 = scalar_select %p233, %s16, 7
          %s235 = smul.addr %s234, 3
          %s236 = smul.addr %s235, 8
          %s237 = scalar_lea.vmem %s1, %s236
        $region40: #{tpu_custom_call.1} parent=35 // pred_fallthru
          _
      $region36: #{tpu_custom_call.1} parent=5 // pred_fallthru
        _
    $region6: #{tpu_custom_call.1} parent=1 // loop_footer
      %s14 = sadd.s32 1, %s10
    $region7: #{tpu_custom_call.1} parent=1 // loop_footer_branch
      %9 = sbr.rel target = $region3
    $region8: #{tpu_custom_call.1} parent=1 // loop_exit
      _
    %238 = vsyncpa [#allocation3], 1
    %s239 = scalar_lea.sflag [#allocation3], 1
    %240 = vsyncpa %s239, 1

</llo_original>
